<compile_context>
chip_gen: v7x
topology: tpu7x:2x2x1
jax: 0.10.0
libtpu: 0.0.40
codegen_flags: <defaults>
</compile_context>

<pallas_src>
import functools
import math

import jax
import jax.numpy as jnp
from jax.experimental import pallas as pl
from jax.experimental.pallas import tpu as pltpu


# --------------------------------------------------------------------------- #
# Kernel 1: fused QKV projection, written head-major (B, H, T, hd).
# --------------------------------------------------------------------------- #
def _qkv_proj_kernel(x_ref, w_ref, b_ref, q_ref, k_ref, v_ref, *, hd):
    x = x_ref[0]                                    # (block_m, C)   MXU dtype
    w = w_ref[0]                                    # (C, 3*hd)      MXU dtype
    qkv = jnp.dot(x, w, preferred_element_type=jnp.float32) + b_ref[0]
    # Softmax scale is pre-folded into the Q columns of w/b outside the kernel.
    q_ref[0, 0] = qkv[:, :hd].astype(q_ref.dtype)
    k_ref[0, 0] = qkv[:, hd:2 * hd].astype(k_ref.dtype)
    v_ref[0, 0] = qkv[:, 2 * hd:].astype(v_ref.dtype)


# --------------------------------------------------------------------------- #
# Kernel 2: flash-style attention over head-major Q/K/V + fused output proj.
# Grid: (B, n_q, H//G, n_kv); G heads are processed per step (static unroll).
# --------------------------------------------------------------------------- #
def _attn_kernel(q_ref, k_ref, v_ref, wp_ref, bp_ref, o_ref,
                 m_scr, l_scr, acc_scr, out_scr, *, G):
    hg = pl.program_id(2)
    ki = pl.program_id(3)
    last_hg = pl.num_programs(2) - 1
    last_ki = pl.num_programs(3) - 1

    # Zero the (block_q, C) output-projection accumulator once per query block.
    @pl.when((hg == 0) & (ki == 0))
    def _():
        out_scr[...] = jnp.zeros(out_scr.shape, out_scr.dtype)

    # Init per-head flash statistics once per (query block, head group).
    @pl.when(ki == 0)
    def _():
        m_scr[...] = jnp.full(m_scr.shape, -jnp.inf, m_scr.dtype)
        l_scr[...] = jnp.zeros(l_scr.shape, l_scr.dtype)
        acc_scr[...] = jnp.zeros(acc_scr.shape, acc_scr.dtype)

    cdt = v_ref.dtype  # native MXU operand dtype (bf16 unless caller overrides)

    for g in range(G):                         # static unroll over grouped heads
        q = q_ref[0, g]                        # (block_q, hd)  (already scaled)
        k = k_ref[0, g]                        # (block_kv, hd)
        v = v_ref[0, g]                        # (block_kv, hd)

        # Contract the last dims of q and k directly: no k.T relayout (XLU-free).
        s = jax.lax.dot_general(
            q, k, dimension_numbers=(((1,), (1,)), ((), ())),
            preferred_element_type=jnp.float32)            # (block_q, block_kv)

        m_prev = m_scr[g]
        m_new = jnp.maximum(m_prev, s.max(axis=-1, keepdims=True))
        alpha = jnp.exp(m_prev - m_new)
        p = jnp.exp(s - m_new)
        # NOTE: p.sum could be folded into the PV matmul (ones column on v) if a
        # bundle dump ever shows the XLU slot binding; not done by default.
        l_scr[g] = alpha * l_scr[g] + p.sum(axis=-1, keepdims=True)
        acc_scr[g] = alpha * acc_scr[g] + jnp.dot(
            p.astype(cdt), v, preferred_element_type=jnp.float32)
        m_scr[g] = m_new

    # Fold each head's normalized output straight into the output projection.
    @pl.when(ki == last_ki)
    def _():
        for g in range(G):
            y = acc_scr[g] * pl.reciprocal(l_scr[g], approx=False)   # fp32 exact
            out_scr[...] += jnp.dot(y.astype(cdt), wp_ref[g],
                                    preferred_element_type=jnp.float32)

    # Epilogue: bias + cast + store (lane-dense (block_q, C) slab).
    @pl.when((hg == last_hg) & (ki == last_ki))
    def _():
        o_ref[0] = (out_scr[...] + bp_ref[...]).astype(o_ref.dtype)


# --------------------------------------------------------------------------- #
# Tiling / target selection helpers.
# --------------------------------------------------------------------------- #
def _tpu_generation():
    try:
        kind = jax.devices()[0].device_kind.lower()
    except Exception:
        return None
    for tag in ("v7", "v6", "v5", "v4", "v3", "v2"):
        if tag in kind:
            return tag
    return None


def _tiling_for(gen):
    """(block_q cap, block_kv cap, vmem_limit_bytes) per TPU generation."""
    if gen == "v7":
        # 64 MiB VMEM per TensorCore: tighter budget, leave compiler headroom.
        return 256, 512, 44 * 1024 * 1024
    if gen in ("v5", "v6"):
        # 128 MiB VMEM, weaker HBM BW on v5e: bigger tiles, raise scoped limit.
        return 512, 1024, 96 * 1024 * 1024
    # Unknown / older generation: conservative tiles, default scoped VMEM limit.
    return 256, 512, None


def _pick_block(t, cap):
    """Largest multiple-of-8 divisor of t that is <= cap (falls back to t)."""
    if t <= cap:
        return t
    for b in range(cap, 7, -1):
        if t % b == 0 and b % 8 == 0:
            return b
    # TODO(synk): masked tail tiles for ragged / prime T instead of one block.
    return t


def _pick_head_group(n_heads, hd, gen):
    """Heads per grid step so G*hd fills the MXU lane width (256 v6e/v7x, 128 v5e)."""
    lane_target = 128 if gen == "v5" else 256
    g = max(1, min(n_heads, lane_target // max(hd, 1), 8))
    while n_heads % g:
        g -= 1
    return g


# --------------------------------------------------------------------------- #
# Public wrapper.
# --------------------------------------------------------------------------- #
def self_attention(x, w_qkv, b_qkv, w_proj, b_proj, n_heads,
                   *, block_q=None, block_kv=None, head_group=None,
                   mxu_dtype=None):
    """x: (B, T, C); w_qkv: (C, 3C); b_qkv: (3C,); w_proj: (C, C); b_proj: (C,)."""
    B, T, C = x.shape
    assert C % n_heads == 0
    H = n_heads
    hd = C // H

    gen = _tpu_generation()
    bq_cap, bkv_cap, vmem_limit = _tiling_for(gen)
    if block_q is None:
        block_q = _pick_block(T, bq_cap)
    if block_kv is None:
        block_kv = _pick_block(T, bkv_cap)
    assert T % block_q == 0 and T % block_kv == 0, "T must divide into blocks"
    n_q, n_kv = T // block_q, T // block_kv
    block_m = block_q
    n_m = T // block_m

    if head_group is None:
        G = _pick_head_group(H, hd, gen)
    else:
        G = head_group
        assert H % G == 0
    n_hg = H // G

    # fp32 activations/weights feed the MXU as bf16 (fp32 accumulation keeps
    # flash statistics and projection accumulators exact enough).
    if mxu_dtype is None:
        mxu_dtype = jnp.bfloat16 if x.dtype == jnp.float32 else x.dtype
    out_dtype = x.dtype
    scale = 1.0 / math.sqrt(hd)

    # One-time head-major weight layouts; softmax scale folded into Q weight/bias.
    w_q, w_k, w_v = jnp.split(w_qkv, 3, axis=1)                     # (C, C) each
    b_q, b_k, b_v = jnp.split(b_qkv, 3)
    w_q = w_q * scale
    b_q = b_q * scale

    def _headify(w):                                                # (C,C)->(H,C,hd)
        return w.reshape(C, H, hd).transpose(1, 0, 2)

    w_h = jnp.concatenate([_headify(w_q), _headify(w_k), _headify(w_v)],
                          axis=-1).astype(mxu_dtype)                # (H, C, 3hd)
    b_h = jnp.concatenate([b_q.reshape(H, 1, hd), b_k.reshape(H, 1, hd),
                           b_v.reshape(H, 1, hd)],
                          axis=-1).astype(jnp.float32)              # (H, 1, 3hd)
    wp_h = w_proj.reshape(H, hd, C).astype(mxu_dtype)               # (H, hd, C)
    bp_2 = b_proj.reshape(1, C).astype(jnp.float32)                 # (1, C)
    x_m = x.astype(mxu_dtype)

    # ---------------- Kernel 1: QKV projection (head-major output) ------------
    proj_kernel = functools.partial(_qkv_proj_kernel, hd=hd)
    qkv_out_shape = jax.ShapeDtypeStruct((B, H, T, hd), mxu_dtype)
    qkv_out_spec = pl.BlockSpec((1, 1, block_m, hd),
                                lambda b, mi, h: (b, h, mi, 0))
    q_hm, k_hm, v_hm = pl.pallas_call(
        proj_kernel,
        out_shape=(qkv_out_shape, qkv_out_shape, qkv_out_shape),
        grid_spec=pltpu.PrefetchScalarGridSpec(
            num_scalar_prefetch=0,
            grid=(B, n_m, H),
            in_specs=[
                pl.BlockSpec((1, block_m, C), lambda b, mi, h: (b, mi, 0)),   # x
                pl.BlockSpec((1, C, 3 * hd), lambda b, mi, h: (h, 0, 0)),     # W head
                pl.BlockSpec((1, 1, 3 * hd), lambda b, mi, h: (h, 0, 0)),     # b head
            ],
            out_specs=[qkv_out_spec, qkv_out_spec, qkv_out_spec],
        ),
        compiler_params=pltpu.CompilerParams(
            dimension_semantics=("parallel", "parallel", "arbitrary"),
            vmem_limit_bytes=vmem_limit,
        ),
    )(x_m, w_h, b_h)

    # ---------------- Kernel 2: attention + fused output projection -----------
    attn_kernel = functools.partial(_attn_kernel, G=G)
    qkv_in_spec = lambda blk: pl.BlockSpec(
        (1, G, blk, hd), lambda b, qi, hg, ki: (b, hg, ki, 0))
    # NOTE: if profiling shows exposed DMA on the inner (kv) axis, add
    # pipeline_mode=pl.Buffered(3) to the K/V BlockSpecs below.
    out = pl.pallas_call(
        attn_kernel,
        out_shape=jax.ShapeDtypeStruct((B, T, C), out_dtype),
        grid_spec=pltpu.PrefetchScalarGridSpec(
            num_scalar_prefetch=0,
            grid=(B, n_q, n_hg, n_kv),
            in_specs=[
                pl.BlockSpec((1, G, block_q, hd),
                             lambda b, qi, hg, ki: (b, hg, qi, 0)),   # Q (resident over ki)
                qkv_in_spec(block_kv),                                # K
                qkv_in_spec(block_kv),                                # V
                pl.BlockSpec((G, hd, C), lambda b, qi, hg, ki: (hg, 0, 0)),  # Wproj group
                pl.BlockSpec((1, C), lambda b, qi, hg, ki: (0, 0)),          # bproj
            ],
            out_specs=pl.BlockSpec((1, block_q, C),
                                   lambda b, qi, hg, ki: (b, qi, 0)),
            scratch_shapes=[
                pltpu.VMEM((G, block_q, 1), jnp.float32),    # running max
                pltpu.VMEM((G, block_q, 1), jnp.float32),    # running denom
                pltpu.VMEM((G, block_q, hd), jnp.float32),   # attention accumulator
                pltpu.VMEM((block_q, C), jnp.float32),       # output-proj accumulator
            ],
        ),
        compiler_params=pltpu.CompilerParams(
            dimension_semantics=("parallel", "parallel", "arbitrary", "arbitrary"),
            vmem_limit_bytes=vmem_limit,
        ),
    )(q_hm, k_hm, v_hm, wp_h, bp_2)
    return out


# --------------------------------------------------------------------------- #
# Pure-JAX reference mirroring the PyTorch module semantics.
# --------------------------------------------------------------------------- #
def reference_self_attention(x, w_qkv, b_qkv, w_proj, b_proj, n_heads):
    B, T, C = x.shape
    hd = C // n_heads
    qkv = x @ w_qkv + b_qkv
    q, k, v = jnp.split(qkv, 3, axis=-1)
    q = q.reshape(B, T, n_heads, hd).transpose(0, 2, 1, 3)
    k = k.reshape(B, T, n_heads, hd).transpose(0, 2, 1, 3)
    v = v.reshape(B, T, n_heads, hd).transpose(0, 2, 1, 3)
    s = jnp.einsum("bhtd,bhsd->bhts", q, k) / math.sqrt(hd)
    p = jax.nn.softmax(s, axis=-1)
    y = jnp.einsum("bhts,bhsd->bhtd", p, v)
    y = y.transpose(0, 2, 1, 3).reshape(B, T, C)
    return y @ w_proj + b_proj


if __name__ == "__main__":
    key = jax.random.PRNGKey(0)
    kx1, kx2, kw1, kb1, kw2, kb2 = jax.random.split(key, 6)

    n_embd, n_heads = 32, 4
    w_qkv = 0.02 * jax.random.normal(kw1, (n_embd, 3 * n_embd), dtype=jnp.float32)
    b_qkv = 0.01 * jax.random.normal(kb1, (3 * n_embd,), dtype=jnp.float32)
    w_proj = 0.02 * jax.random.normal(kw2, (n_embd, n_embd), dtype=jnp.float32)
    b_proj = 0.01 * jax.random.normal(kb2, (n_embd,), dtype=jnp.float32)
    params = (w_qkv, b_qkv, w_proj, b_proj)

    # Config 1: module-scale smoke test (single q/kv block, all heads in one group).
    B, T = 2, 8
    x = jax.random.normal(kx1, (B, T, n_embd), dtype=jnp.float32)
    out = jax.block_until_ready(self_attention(x, *params, n_heads))
    ref = reference_self_attention(x, *params, n_heads)
    assert out.shape == (B, T, n_embd)
    err = jnp.max(jnp.abs(out - ref))
    # Tolerance accounts for bf16 MXU operands (fp32 accumulation throughout).
    assert jnp.allclose(out, ref, atol=2e-3, rtol=2e-2), f"config1 mismatch {err}"

    # Config 2: exercises multi-block / multi-head-group accumulation paths.
    T2 = 16
    x2 = jax.random.normal(kx2, (B, T2, n_embd), dtype=jnp.float32)
    out2 = jax.block_until_ready(
        self_attention(x2, *params, n_heads,
                       block_q=8, block_kv=8, head_group=2))
    ref2 = reference_self_attention(x2, *params, n_heads)
    err2 = jnp.max(jnp.abs(out2 - ref2))
    assert jnp.allclose(out2, ref2, atol=2e-3, rtol=2e-2), f"config2 mismatch {err2}"

    print("KERNEL_OK")
</pallas_src>

<mosaic_0001>
module attributes {stable_mosaic.version = 11 : i64} {
  func.func @_qkv_proj_kernel(%arg0: i32, %arg1: i32, %arg2: i32, %arg3: memref<1x8x32xbf16, #tpu.memory_space<vmem>>, %arg4: memref<1x32x24xbf16, #tpu.memory_space<vmem>>, %arg5: memref<1x1x24xf32, #tpu.memory_space<vmem>>, %arg6: memref<1x1x8x8xbf16, #tpu.memory_space<vmem>>, %arg7: memref<1x1x8x8xbf16, #tpu.memory_space<vmem>>, %arg8: memref<1x1x8x8xbf16, #tpu.memory_space<vmem>>) attributes {dimension_semantics = [#tpu.dimension_semantics<parallel>, #tpu.dimension_semantics<parallel>, #tpu.dimension_semantics<arbitrary>], iteration_bounds = array<i64: 2, 1, 4>, scalar_prefetch = 0 : i64, scratch_operands = 0 : i64, tpu.core_type = #tpu.core_type<tc>, window_params = [{transform_indices = @transform_0, window_bounds = array<i64: 1, 8, 32>}, {transform_indices = @transform_1, window_bounds = array<i64: 1, 32, 24>}, {transform_indices = @transform_2, window_bounds = array<i64: 1, 1, 24>}, {transform_indices = @transform_3, window_bounds = array<i64: 1, 1, 8, 8>}, {transform_indices = @transform_4, window_bounds = array<i64: 1, 1, 8, 8>}, {transform_indices = @transform_5, window_bounds = array<i64: 1, 1, 8, 8>}]} {
    %c0 = arith.constant 0 : index
    %c0_0 = arith.constant 0 : index
    %c0_1 = arith.constant 0 : index
    %0 = vector.load %arg3[%c0, %c0_0, %c0_1] : memref<1x8x32xbf16, #tpu.memory_space<vmem>>, vector<1x8x32xbf16>
    %1 = vector.shape_cast %0 : vector<1x8x32xbf16> to vector<8x32xbf16>
    %c0_2 = arith.constant 0 : index
    %c0_3 = arith.constant 0 : index
    %c0_4 = arith.constant 0 : index
    %2 = vector.load %arg4[%c0_2, %c0_3, %c0_4] : memref<1x32x24xbf16, #tpu.memory_space<vmem>>, vector<1x32x24xbf16>
    %3 = vector.shape_cast %2 : vector<1x32x24xbf16> to vector<32x24xbf16>
    %cst = arith.constant dense<0.000000e+00> : vector<8x24xf32>
    %4 = tpu.matmul %1, %3, %cst {dimension_numbers = #tpu.dot_dimension_numbers<[1], [0], [0], [1], [0, 0, 1, 1], [], []>} : vector<8x32xbf16>, vector<32x24xbf16>, vector<8x24xf32> -> vector<8x24xf32>
    %c0_5 = arith.constant 0 : index
    %c0_6 = arith.constant 0 : index
    %c0_7 = arith.constant 0 : index
    %5 = vector.load %arg5[%c0_5, %c0_6, %c0_7] : memref<1x1x24xf32, #tpu.memory_space<vmem>>, vector<1x1x24xf32>
    %6 = vector.shape_cast %5 : vector<1x1x24xf32> to vector<1x24xf32>
    %7 = vector.broadcast %6 : vector<1x24xf32> to vector<8x24xf32>
    %8 = arith.addf %4, %7 : vector<8x24xf32>
    %9 = vector.extract_strided_slice %8 {offsets = [0, 0], sizes = [8, 8], strides = [1, 1]} : vector<8x24xf32> to vector<8x8xf32>
    %10 = arith.truncf %9 : vector<8x8xf32> to vector<8x8xbf16>
    %c0_8 = arith.constant 0 : index
    %c0_9 = arith.constant 0 : index
    %c0_10 = arith.constant 0 : index
    %c0_11 = arith.constant 0 : index
    %11 = vector.load %arg6[%c0_8, %c0_9, %c0_10, %c0_11] : memref<1x1x8x8xbf16, #tpu.memory_space<vmem>>, vector<1x1x8x8xbf16>
    %12 = vector.shape_cast %11 : vector<1x1x8x8xbf16> to vector<8x8xbf16>
    %13 = vector.shape_cast %10 : vector<8x8xbf16> to vector<1x1x8x8xbf16>
    tpu.vector_store %arg6[%c0_8, %c0_9, %c0_10, %c0_11], %13 {strides = array<i32>} : memref<1x1x8x8xbf16, #tpu.memory_space<vmem>>, vector<1x1x8x8xbf16>,
    %14 = vector.extract_strided_slice %8 {offsets = [0, 8], sizes = [8, 8], strides = [1, 1]} : vector<8x24xf32> to vector<8x8xf32>
    %15 = arith.truncf %14 : vector<8x8xf32> to vector<8x8xbf16>
    %c0_12 = arith.constant 0 : index
    %c0_13 = arith.constant 0 : index
    %c0_14 = arith.constant 0 : index
    %c0_15 = arith.constant 0 : index
    %16 = vector.load %arg7[%c0_12, %c0_13, %c0_14, %c0_15] : memref<1x1x8x8xbf16, #tpu.memory_space<vmem>>, vector<1x1x8x8xbf16>
    %17 = vector.shape_cast %16 : vector<1x1x8x8xbf16> to vector<8x8xbf16>
    %18 = vector.shape_cast %15 : vector<8x8xbf16> to vector<1x1x8x8xbf16>
    tpu.vector_store %arg7[%c0_12, %c0_13, %c0_14, %c0_15], %18 {strides = array<i32>} : memref<1x1x8x8xbf16, #tpu.memory_space<vmem>>, vector<1x1x8x8xbf16>,
    %19 = vector.extract_strided_slice %8 {offsets = [0, 16], sizes = [8, 8], strides = [1, 1]} : vector<8x24xf32> to vector<8x8xf32>
    %20 = arith.truncf %19 : vector<8x8xf32> to vector<8x8xbf16>
    %c0_16 = arith.constant 0 : index
    %c0_17 = arith.constant 0 : index
    %c0_18 = arith.constant 0 : index
    %c0_19 = arith.constant 0 : index
    %21 = vector.load %arg8[%c0_16, %c0_17, %c0_18, %c0_19] : memref<1x1x8x8xbf16, #tpu.memory_space<vmem>>, vector<1x1x8x8xbf16>
    %22 = vector.shape_cast %21 : vector<1x1x8x8xbf16> to vector<8x8xbf16>
    %23 = vector.shape_cast %20 : vector<8x8xbf16> to vector<1x1x8x8xbf16>
    tpu.vector_store %arg8[%c0_16, %c0_17, %c0_18, %c0_19], %23 {strides = array<i32>} : memref<1x1x8x8xbf16, #tpu.memory_space<vmem>>, vector<1x1x8x8xbf16>,
    return
  }
  func.func @transform_0(%arg0: i32, %arg1: i32, %arg2: i32) -> (i32, i32, i32) {
    %c0_i32 = arith.constant 0 : i32
    %c0_i32_0 = arith.constant 0 : i32
    return %arg0, %arg1, %c0_i32 : i32, i32, i32
  }
  func.func @transform_1(%arg0: i32, %arg1: i32, %arg2: i32) -> (i32, i32, i32) {
    %c0_i32 = arith.constant 0 : i32
    %c0_i32_0 = arith.constant 0 : i32
    %c0_i32_1 = arith.constant 0 : i32
    return %arg2, %c0_i32, %c0_i32_0 : i32, i32, i32
  }
  func.func @transform_2(%arg0: i32, %arg1: i32, %arg2: i32) -> (i32, i32, i32) {
    %c0_i32 = arith.constant 0 : i32
    %c0_i32_0 = arith.constant 0 : i32
    %c0_i32_1 = arith.constant 0 : i32
    return %arg2, %c0_i32, %c0_i32_0 : i32, i32, i32
  }
  func.func @transform_3(%arg0: i32, %arg1: i32, %arg2: i32) -> (i32, i32, i32, i32) {
    %c0_i32 = arith.constant 0 : i32
    %c0_i32_0 = arith.constant 0 : i32
    return %arg0, %arg2, %arg1, %c0_i32 : i32, i32, i32, i32
  }
  func.func @transform_4(%arg0: i32, %arg1: i32, %arg2: i32) -> (i32, i32, i32, i32) {
    %c0_i32 = arith.constant 0 : i32
    %c0_i32_0 = arith.constant 0 : i32
    return %arg0, %arg2, %arg1, %c0_i32 : i32, i32, i32, i32
  }
  func.func @transform_5(%arg0: i32, %arg1: i32, %arg2: i32) -> (i32, i32, i32, i32) {
    %c0_i32 = arith.constant 0 : i32
    %c0_i32_0 = arith.constant 0 : i32
    return %arg0, %arg2, %arg1, %c0_i32 : i32, i32, i32, i32
  }
}

</mosaic_0001>

<llo_original>
// kernel: tpu_custom_call.1
$region0: #{tpu_custom_call.1}
  #allocation0 [shape = 'u32[]', space=smem, size = 0x4, offset = 0x4, fixed_abs, tag = 'smem constant byte address 0x4 - core index']
  #allocation1 [shape = 'u32[144,128]{1,0:T(1,128)}', space=vmem, size = 0x12000, scoped, tag = 'internal scratch']
  %s0 = inlined_call_operand.vmem [shape: bf16[2,8,32], index: 0, kind: input, shape index: {}]
  %s1 = inlined_call_operand.vmem [shape: bf16[4,32,24], index: 1, kind: input, shape index: {}]
  %s2 = inlined_call_operand.vmem [shape: f32[4,1,24], index: 2, kind: input, shape index: {}]
  %s3 = inlined_call_operand.hbm [shape: bf16[2,4,8,8], index: 3, kind: output, shape index: {0}]
  %s4 = inlined_call_operand.hbm [shape: bf16[2,4,8,8], index: 4, kind: output, shape index: {1}]
  %s5 = inlined_call_operand.hbm [shape: bf16[2,4,8,8], index: 5, kind: output, shape index: {2}]
  %6 = xla_tuple %s3, %s4, %s5
  %s7 = sld [smem:[#allocation0]]
  $region61: #{tpu_custom_call.1} parent=0
    _
  %s9 = ssub.s32 1, %s7
  %s10 = scalar_select 0, %s9, %s7
  $region1: #{tpu_custom_call.1} parent=0
    #allocation2 [shape = 'u8[4096]{0}', space=vmem, size = 0x1000, scoped, tag = 'output window, operand 0']
    #allocation3 [shape = 's32[2]{0}', space=sflag, size = 0x8, scoped, tag = 'scoped memory for tpu_custom_call.1']
    #allocation4 [shape = 'u8[4096]{0}', space=vmem, size = 0x1000, scoped, tag = 'output window, operand 1']
    #allocation5 [shape = 's32[2]{0}', space=sflag, size = 0x8, scoped, tag = 'scoped memory for tpu_custom_call.1']
    #allocation6 [shape = 'u8[4096]{0}', space=vmem, size = 0x1000, scoped, tag = 'output window, operand 2']
    %11 = vsyncpa [#allocation3], 0
    %s12 = scalar_lea.sflag [#allocation3], 1
    %13 = vsyncpa %s12, 0
    %14 = vsyncpa [#allocation5], 0
    %s15 = scalar_lea.sflag [#allocation5], 1
    %16 = vsyncpa %s15, 0
    loop: start=0, step=1, limit=10
    $region2: #{tpu_custom_call.1} parent=1 // loop_pre_header
      _
    $region3: #{tpu_custom_call.1} parent=1 // loop_header
      %s18 = sphi 0, %s22
      %p19 = scmp.ge.s32.totalorder %s18, 10
      %s25 = sphi 0, %s44
      %s26 = sphi 0, %s40
      %s27 = sphi 0, %s36
      %s28 = sphi 0, %s25
      %s29 = sphi 0, %s26
      %s30 = sphi 0, %s27
      %s31 = sphi 0, %s28
      %s32 = sphi 0, %s29
      %s33 = sphi 0, %s30
      %s49 = sphi 0, %s51
      %s52 = sphi 0, %s49
      %s53 = sphi 0, %s52
      %s69 = sphi 0, %s53
      %s75 = sphi 0, %s77
      %s78 = sphi 0, %s75
      %s79 = sphi 0, %s78
      %s95 = sphi 0, %s79
      %s101 = sphi 0, %s103
      %s104 = sphi 0, %s101
      %s105 = sphi 0, %s104
      %s121 = sphi 0, %s105
      %s131 = sphi 0, %s133
      %s134 = sphi 0, %s131
      %s135 = sphi 0, %s134
      %s151 = sphi 0, %s135
      %s161 = sphi 0, %s163
      %s164 = sphi 0, %s161
      %s165 = sphi 0, %s164
      %s181 = sphi 0, %s165
      %s191 = sphi 0, %s193
      %s194 = sphi 0, %s191
      %s195 = sphi 0, %s194
      %s211 = sphi 0, %s195
    $region4: #{tpu_custom_call.1} parent=1 // loop_header_branch
      %21 = sbr.rel (%p19) target = $region8
    $region5: #{tpu_custom_call.1} parent=1 // loop_body
      %s23 = ssub.s32 %s18, 1
      %s24 = ssub.s32 %s18, 2
      %s34 = sadd.s32 1, %s27
      %p35 = scmp.ge.s32.totalorder %s34, 4
      %s36 = scalar_select %p35, 0, %s34
      %s37 = sadd.s32 1, %s26
      %s38 = scalar_select %p35, %s37, %s26
      %p39 = scmp.ge.s32.totalorder %s38, 1
      %s40 = scalar_select %p39, 0, %s38
      %s41 = sadd.s32 1, %s25
      %s42 = scalar_select %p39, %s41, %s25
      %p43 = scmp.ge.s32.totalorder %s42, 2
      %s44 = scalar_select %p43, 0, %s42
      %s45 = ssub.s32 %s25, %s44
      %s46 = ssub.s32 %s26, %s40
      %s47 = sor.u32 %s45, %s46
      %p48 = scmp.eq.s32.totalorder %s47, 0
      %s50 = sadd.s32 %s49, 1
      %s51 = scalar_select %p48, %s49, %s50
      %p54 = pneg %p48
      %p55 = scmp.eq.s32.totalorder %s18, 7
      %p56 = por %p54, %p55
      %p57 = scmp.ne.s32.totalorder %s49, %s52
      %p58 = scmp.eq.s32.totalorder %s18, 0
      %p59 = por %p57, %p58
      %p60 = scmp.ne.s32.totalorder %s49, %s52
      %p61 = scmp.eq.s32.totalorder %s23, 7
      %p62 = por %p60, %p61
      %p63 = scmp.ne.s32.totalorder %s52, %s53
      %p64 = scmp.eq.s32.totalorder %s23, 0
      %p65 = por %p63, %p64
      %p66 = scmp.ne.s32.totalorder %s52, %s53
      %p67 = scmp.eq.s32.totalorder %s24, 7
      %p68 = por %p66, %p67
      %p70 = scmp.ne.s32.totalorder %s53, %s69
      %p71 = scmp.eq.s32.totalorder %s24, 0
      %p72 = por %p70, %p71
      %s73 = ssub.s32 %s27, %s36
      %p74 = scmp.eq.s32.totalorder %s73, 0
      %s76 = sadd.s32 %s75, 1
      %s77 = scalar_select %p74, %s75, %s76
      %p80 = pneg %p74
      %p81 = scmp.eq.s32.totalorder %s18, 7
      %p82 = por %p80, %p81
      %p83 = scmp.ne.s32.totalorder %s75, %s78
      %p84 = scmp.eq.s32.totalorder %s18, 0
      %p85 = por %p83, %p84
      %p86 = scmp.ne.s32.totalorder %s75, %s78
      %p87 = scmp.eq.s32.totalorder %s23, 7
      %p88 = por %p86, %p87
      %p89 = scmp.ne.s32.totalorder %s78, %s79
      %p90 = scmp.eq.s32.totalorder %s23, 0
      %p91 = por %p89, %p90
      %p92 = scmp.ne.s32.totalorder %s78, %s79
      %p93 = scmp.eq.s32.totalorder %s24, 7
      %p94 = por %p92, %p93
      %p96 = scmp.ne.s32.totalorder %s79, %s95
      %p97 = scmp.eq.s32.totalorder %s24, 0
      %p98 = por %p96, %p97
      %s99 = ssub.s32 %s27, %s36
      %p100 = scmp.eq.s32.totalorder %s99, 0
      %s102 = sadd.s32 %s101, 1
      %s103 = scalar_select %p100, %s101, %s102
      %p106 = pneg %p100
      %p107 = scmp.eq.s32.totalorder %s18, 7
      %p108 = por %p106, %p107
      %p109 = scmp.ne.s32.totalorder %s101, %s104
      %p110 = scmp.eq.s32.totalorder %s18, 0
      %p111 = por %p109, %p110
      %p112 = scmp.ne.s32.totalorder %s101, %s104
      %p113 = scmp.eq.s32.totalorder %s23, 7
      %p114 = por %p112, %p113
      %p115 = scmp.ne.s32.totalorder %s104, %s105
      %p116 = scmp.eq.s32.totalorder %s23, 0
      %p117 = por %p115, %p116
      %p118 = scmp.ne.s32.totalorder %s104, %s105
      %p119 = scmp.eq.s32.totalorder %s24, 7
      %p120 = por %p118, %p119
      %p122 = scmp.ne.s32.totalorder %s105, %s121
      %p123 = scmp.eq.s32.totalorder %s24, 0
      %p124 = por %p122, %p123
      %s125 = ssub.s32 %s25, %s44
      %s126 = ssub.s32 %s27, %s36
      %s127 = sor.u32 %s125, %s126
      %s128 = ssub.s32 %s26, %s40
      %s129 = sor.u32 %s127, %s128
      %p130 = scmp.eq.s32.totalorder %s129, 0
      %s132 = sadd.s32 %s131, 1
      %s133 = scalar_select %p130, %s131, %s132
      %p136 = pneg %p130
      %p137 = scmp.eq.s32.totalorder %s18, 7
      %p138 = por %p136, %p137
      %p139 = scmp.ne.s32.totalorder %s131, %s134
      %p140 = scmp.eq.s32.totalorder %s18, 0
      %p141 = por %p139, %p140
      %p142 = scmp.ne.s32.totalorder %s131, %s134
      %p143 = scmp.eq.s32.totalorder %s23, 7
      %p144 = por %p142, %p143
      %p145 = scmp.ne.s32.totalorder %s134, %s135
      %p146 = scmp.eq.s32.totalorder %s23, 0
      %p147 = por %p145, %p146
      %p148 = scmp.ne.s32.totalorder %s134, %s135
      %p149 = scmp.eq.s32.totalorder %s24, 7
      %p150 = por %p148, %p149
      %p152 = scmp.ne.s32.totalorder %s135, %s151
      %p153 = scmp.eq.s32.totalorder %s24, 0
      %p154 = por %p152, %p153
      %s155 = ssub.s32 %s25, %s44
      %s156 = ssub.s32 %s27, %s36
      %s157 = sor.u32 %s155, %s156
      %s158 = ssub.s32 %s26, %s40
      %s159 = sor.u32 %s157, %s158
      %p160 = scmp.eq.s32.totalorder %s159, 0
      %s162 = sadd.s32 %s161, 1
      %s163 = scalar_select %p160, %s161, %s162
      %p166 = pneg %p160
      %p167 = scmp.eq.s32.totalorder %s18, 7
      %p168 = por %p166, %p167
      %p169 = scmp.ne.s32.totalorder %s161, %s164
      %p170 = scmp.eq.s32.totalorder %s18, 0
      %p171 = por %p169, %p170
      %p172 = scmp.ne.s32.totalorder %s161, %s164
      %p173 = scmp.eq.s32.totalorder %s23, 7
      %p174 = por %p172, %p173
      %p175 = scmp.ne.s32.totalorder %s164, %s165
      %p176 = scmp.eq.s32.totalorder %s23, 0
      %p177 = por %p175, %p176
      %p178 = scmp.ne.s32.totalorder %s164, %s165
      %p179 = scmp.eq.s32.totalorder %s24, 7
      %p180 = por %p178, %p179
      %p182 = scmp.ne.s32.totalorder %s165, %s181
      %p183 = scmp.eq.s32.totalorder %s24, 0
      %p184 = por %p182, %p183
      %s185 = ssub.s32 %s25, %s44
      %s186 = ssub.s32 %s27, %s36
      %s187 = sor.u32 %s185, %s186
      %s188 = ssub.s32 %s26, %s40
      %s189 = sor.u32 %s187, %s188
      %p190 = scmp.eq.s32.totalorder %s189, 0
      %s192 = sadd.s32 %s191, 1
      %s193 = scalar_select %p190, %s191, %s192
      %p196 = pneg %p190
      %p197 = scmp.eq.s32.totalorder %s18, 7
      %p198 = por %p196, %p197
      %p199 = scmp.ne.s32.totalorder %s191, %s194
      %p200 = scmp.eq.s32.totalorder %s18, 0
      %p201 = por %p199, %p200
      %p202 = scmp.ne.s32.totalorder %s191, %s194
      %p203 = scmp.eq.s32.totalorder %s23, 7
      %p204 = por %p202, %p203
      %p205 = scmp.ne.s32.totalorder %s194, %s195
      %p206 = scmp.eq.s32.totalorder %s23, 0
      %p207 = por %p205, %p206
      %p208 = scmp.ne.s32.totalorder %s194, %s195
      %p209 = scmp.eq.s32.totalorder %s24, 7
      %p210 = por %p208, %p209
      %p212 = scmp.ne.s32.totalorder %s195, %s211
      %p213 = scmp.eq.s32.totalorder %s24, 0
      %p214 = por %p212, %p213
      %p215 = scmp.le.s32.totalorder 1, %s18
      %p216 = scmp.lt.s32.totalorder %s18, 9
      %p217 = pnand %p215, %p216
      %p218 = pneg %p217
      // Predicated region
      $region9: #{tpu_custom_call.1} parent=5 // pred_check
        _
      $region10: #{tpu_custom_call.1} parent=5 // pred_check_branch
        %220 = sbr.rel (%p217) target = $region12
      $region11: #{tpu_custom_call.1} parent=5 // pred_region
        %s221 = ssub.s32 %s18, 1
      $region12: #{tpu_custom_call.1} parent=5 // pred_fallthru
        _
      %p222 = scmp.lt.s32.totalorder %s18, 8
      // Predicated region
      $region13: #{tpu_custom_call.1} parent=5 // pred_check
        %p223 = pneg %p222
      $region14: #{tpu_custom_call.1} parent=5 // pred_check_branch
        %225 = sbr.rel (%p223) target = $region16
      $region15: #{tpu_custom_call.1} parent=5 // pred_region
        // Predicated region
        $region17: #{tpu_custom_call.1} parent=15 // pred_check
          %p226 = pneg %p59
        $region18: #{tpu_custom_call.1} parent=15 // pred_check_branch
          %228 = sbr.rel (%p226) target = $region20
        $region19: #{tpu_custom_call.1} parent=15 // pred_region
          %p229 = scmp.lt.s32.totalorder %s25, 1
          %s230 = scalar_select %p229, %s25, 1
          %p231 = scmp.lt.s32.totalorder %s26, 0
          %s232 = scalar_select %p231, %s26, 0
          %s233 = sadd.s32 %s232, %s230
          %s234 = smul.addr %s233, 4
          %s235 = scalar_lea.vmem %s0, %s234
        $region20: #{tpu_custom_call.1} parent=15 // pred_fallthru
          _
        // Predicated region
        $region21: #{tpu_custom_call.1} parent=15 // pred_check
          %p236 = pneg %p85
        $region22: #{tpu_custom_call.1} parent=15 // pred_check_branch
          %238 = sbr.rel (%p236) target = $region24
        $region23: #{tpu_custom_call.1} parent=15 // pred_region
          %p239 = scmp.lt.s32.totalorder %s27, 3
          %s240 = scalar_select %p239, %s27, 3
          %s241 = smul.addr %s240, 4
          %s242 = smul.addr %s241, 4
          %s243 = scalar_lea.vmem %s1, %s242
        $region24: #{tpu_custom_call.1} parent=15 // pred_fallthru
          _
        // Predicated region
        $region25: #{tpu_custom_call.1} parent=15 // pred_check
          %p244 = pneg %p111
        $region26: #{tpu_custom_call.1} parent=15 // pred_check_branch
          %246 = sbr.rel (%p244) target = $region28
        $region27: #{tpu_custom_call.1} parent=15 // pred_region
          %p247 = scmp.lt.s32.totalorder %s27, 3
          %s248 = scalar_select %p247, %s27, 3
          %s249 = scalar_lea.vmem %s2, %s248
        $region28: #{tpu_custom_call.1} parent=15 // pred_fallthru
          _
      $region16: #{tpu_custom_call.1} parent=5 // pred_fallthru
        _
      %p250 = scmp.le.s32.totalorder 1, %s18
      %p251 = scmp.lt.s32.totalorder %s18, 9
      %p252 = pnand %p250, %p251
      %p253 = pneg %p252
      // Predicated region
      $region29: #{tpu_custom_call.1} parent=5 // pred_check
        _
      $region30: #{tpu_custom_call.1} parent=5 // pred_check_branch
        %255 = sbr.rel (%p252) target = $region32
      $region31: #{tpu_custom_call.1} parent=5 // pred_region
        %s256 = ssub.s32 %s18, 1
        %p257 = scmp.lt.s32.totalorder %s28, 1
        %s258 = scalar_select %p257, %s28, 1
        %p259 = scmp.lt.s32.totalorder %s29, 0
        %s260 = scalar_select %p259, %s29, 0
        %s261 = sadd.s32 %s260, %s258
        %s262 = smul.addr %s261, 4
        %s263 = scalar_lea.vmem %s0, %s262
        %p264 = pneg %p65
        %p265 = pneg %p62
        %p266 = scmp.lt.s32.totalorder %s30, 3
        %s267 = scalar_select %p266, %s30, 3
        %s268 = smul.addr %s267, 4
        %s269 = smul.addr %s268, 4
        %s270 = scalar_lea.vmem %s1, %s269
        %p271 = pneg %p91
        %p272 = pneg %p88
        %p273 = scmp.lt.s32.totalorder %s30, 3
        %s274 = scalar_select %p273, %s30, 3
        %s275 = scalar_lea.vmem %s2, %s274
        %p276 = pneg %p117
        %p277 = pneg %p114
        %p278 = pneg %p147
        %p279 = pneg %p144
        %s280 = sand.u32 %s134, 1
        %s281 = scalar_lea.sflag [#allocation3], %s280
        %s282 = sand.u32 %s134, 1
        %s283 = smul.addr %s282, 4
        %s284 = scalar_lea.vmem [#allocation2], %s283
        %p285 = pneg %p177
        %p286 = pneg %p174
        %s287 = sand.u32 %s23, 1
        %s288 = scalar_lea.sflag [#allocation5], %s287
        %s289 = sand.u32 %s164, 1
        %s290 = smul.addr %s289, 4
        %s291 = scalar_lea.vmem [#allocation4], %s290
        %p292 = pneg %p207
        %p293 = pneg %p204
        %s294 = sand.u32 %s23, 1
        %s295 = scalar_lea.sflag [#allocation5], %s294
        %s296 = sand.u32 %s194, 1
        %s297 = smul.addr %s296, 4
        %s298 = scalar_lea.vmem [#allocation6], %s297
        %p299 = scmp.lt.s32.totalorder %s28, 1
        %s300 = scalar_select %p299, %s28, 1
        %p301 = scmp.lt.s32.totalorder %s29, 0
        %s302 = scalar_select %p301, %s29, 0
        %s303 = sadd.s32 %s302, %s300
        %s304 = smul.addr %s303, 4
        %s305 = scalar_lea.vmem %s0, %s304
        %p306 = scmp.lt.s32.totalorder %s30, 3
        %s307 = scalar_select %p306, %s30, 3
        %s308 = smul.addr %s307, 4
        %s309 = smul.addr %s308, 4
        %s310 = scalar_lea.vmem %s1, %s309
        %p311 = scmp.lt.s32.totalorder %s30, 3
        %s312 = scalar_select %p311, %s30, 3
        %s313 = scalar_lea.vmem %s2, %s312
        %v315 = vld [vmem:[%s305] sm:$0xf]
        %v316 = vld [vmem:[%s310] sm:$0xf]
        %v317 = vld [vmem:[%s310 + $0x4] sm:$0xf]
        %v318 = vld [vmem:[%s310 + $0x8] sm:$0xf]
        %v319 = vld [vmem:[%s310 + $0xc] sm:$0xf]
        %v320 = vld [vmem:[%s313] sm:$0x1]
        %v322 = vlaneseq
        %v323 = vshrl.u32 %v322, 7
        %v324 = vsub.s32 0, %v323
        %v325 = vrot.slane %v320, %v324
        %v331 = vunpack.c.l.b16 %v316
        %v332 = vunpack.c.l.b16 %v317
        %v333 = vunpack.c.l.b16 %v318
        %v334 = vunpack.c.l.b16 %v319
        %v335 = vpack.c.b16 %v332, %v331
        %v336 = vpack.c.b16 %v334, %v333
        %vm339 = vcmask 261120
        %v341 = vsel %vm339, %v315, 0
        %343 = vmatprep.subr.bf16.mxu0 0
        %344 = vmatpush1.bf16.msra.mxu0 %v335
        %345 = vmatprep.subr.bf16.mxu0 0
        %346 = vmatpush1.bf16.msra.mxu0 %v336
        %347 = vmatprep.subr.bf16.mxu0 0
        %348 = vmatpush1.bf16.msra.mxu0 0
        %349 = vmatprep.subr.bf16.mxu0 0
        %350 = vmatpush1.bf16.msra.mxu0 0
        %351 = vmatprep.subr.bf16.mxu0 0
        %352 = vmatpush1.bf16.msra.mxu0 0
        %353 = vmatprep.subr.bf16.mxu0 0
        %354 = vmatpush1.bf16.msra.mxu0 0
        %355 = vmatprep.subr.bf16.mxu0 0
        %356 = vmatpush1.bf16.msra.mxu0 0
        %357 = vmatprep.subr.bf16.mxu0 0
        %358 = vmatpush1.bf16.msra.mxu0 0
        %359 = vmatprep.subr.bf16.mxu0 0
        %360 = vmatpush1.bf16.msra.mxu0 0
        %361 = vmatprep.subr.bf16.mxu0 0
        %362 = vmatpush1.bf16.msra.mxu0 0
        %363 = vmatprep.subr.bf16.mxu0 0
        %364 = vmatpush1.bf16.msra.mxu0 0
        %365 = vmatprep.subr.bf16.mxu0 0
        %366 = vmatpush1.bf16.msra.mxu0 0
        %367 = vmatprep.subr.bf16.mxu0 0
        %368 = vmatpush1.bf16.msra.mxu0 0
        %369 = vmatprep.subr.bf16.mxu0 0
        %370 = vmatpush1.bf16.msra.mxu0 0
        %371 = vmatprep.subr.bf16.mxu0 0
        %372 = vmatpush1.bf16.msra.mxu0 0
        %373 = vmatprep.subr.bf16.mxu0 0
        %374 = vmatpush1.bf16.msra.mxu0 0
        %375 = vmatprep.mubr.bf16.mxu0 0
        %376 = vmatmul.mubr.bf16.gmra.mrb[0].mxu0 %v341
        %v377 = vpop.f32.mrb[0].mxu0
        %v378 = vadd.f32 %v325, %v377
        %v379 = vpop.f32.mrb[0].mxu0
        %v380 = vpop.f32.mrb[0].mxu0
        %v381 = vpop.f32.mrb[0].mxu0
        %382 = vdwg.mxu0
        %v383 = vpack.c.bf16 %v378, %v378
        %vm384 = vcmask 60416
        %385 = vst.msk [vmem:[%s284] sm:$0xf] %vm384, %v383
        %v387 = vunpack.c.l.b16 %v383
        %v388 = vpack.c.b16 %v387, %v387
        %389 = vrot.lane.b32.xlu0 %v388, 120
        %v390 = vpop.permute.xlu0 %389
        %392 = vst.msk [vmem:[%s291] sm:$0xf] %vm384, %v390
        %393 = vrot.lane.b32.xlu0 %v388, 112
        %v394 = vpop.permute.xlu0 %393
        %396 = vst.msk [vmem:[%s298] sm:$0xf] %vm384, %v394
        %s397 = sand.u32 %s134, 1
        %s398 = scalar_lea.sflag [#allocation3], %s397
        %s399 = sand.u32 %s134, 1
        %s400 = smul.addr %s399, 4
        %s401 = scalar_lea.vmem [#allocation2], %s400
        %s402 = sand.u32 %s23, 1
        %s403 = scalar_lea.sflag [#allocation5], %s402
        %s404 = sand.u32 %s164, 1
        %s405 = smul.addr %s404, 4
        %s406 = scalar_lea.vmem [#allocation4], %s405
        %s407 = sand.u32 %s23, 1
        %s408 = scalar_lea.sflag [#allocation5], %s407
        %s409 = sand.u32 %s194, 1
        %s410 = smul.addr %s409, 4
        %s411 = scalar_lea.vmem [#allocation6], %s410
        // Predicated region
        $region33: #{tpu_custom_call.1} parent=31 // pred_check
          %p412 = pneg %p144
        $region34: #{tpu_custom_call.1} parent=31 // pred_check_branch
          %414 = sbr.rel (%p412) target = $region36
        $region35: #{tpu_custom_call.1} parent=31 // pred_region
          %s416 = ssub.s32 64, 64
          %417 = vsyncadd %s398, %s416
          %s418 = sadd.s32 %s29, %s30
          %s419 = smul.addr %s28, 4
          %s420 = sadd.s32 %s418, %s419
          %s421 = smul.addr %s420, 64
          %s422 = scalar_lea.hbm %s3, %s421
          %s424 = sshll.u32 %s401, 4
          %s425 = int_to_ptr.vmem [resolvable:$true] %s424
          %427 = dma.vmem_to_hbm [thread:$0]  %s425, 64, %s422, %s398
        $region36: #{tpu_custom_call.1} parent=31 // pred_fallthru
          _
        // Predicated region
        $region37: #{tpu_custom_call.1} parent=31 // pred_check
          %p428 = pneg %p174
        $region38: #{tpu_custom_call.1} parent=31 // pred_check_branch
          %430 = sbr.rel (%p428) target = $region40
        $region39: #{tpu_custom_call.1} parent=31 // pred_region
          %s432 = ssub.s32 64, 64
          %433 = vsyncadd %s403, %s432
          %s434 = sadd.s32 %s29, %s30
          %s435 = smul.addr %s28, 4
          %s436 = sadd.s32 %s434, %s435
          %s437 = smul.addr %s436, 64
          %s438 = scalar_lea.hbm %s4, %s437
          %s440 = sshll.u32 %s406, 4
          %s441 = int_to_ptr.vmem [resolvable:$true] %s440
          %443 = dma.vmem_to_hbm [thread:$0]  %s441, 64, %s438, %s403
        $region40: #{tpu_custom_call.1} parent=31 // pred_fallthru
          _
        // Predicated region
        $region41: #{tpu_custom_call.1} parent=31 // pred_check
          %p444 = pneg %p204
        $region42: #{tpu_custom_call.1} parent=31 // pred_check_branch
          %446 = sbr.rel (%p444) target = $region44
        $region43: #{tpu_custom_call.1} parent=31 // pred_region
          %s448 = ssub.s32 64, 64
          %449 = vsyncadd %s408, %s448
          %s450 = sadd.s32 %s29, %s30
          %s451 = smul.addr %s28, 4
          %s452 = sadd.s32 %s450, %s451
          %s453 = smul.addr %s452, 64
          %s454 = scalar_lea.hbm %s5, %s453
          %s456 = sshll.u32 %s411, 4
          %s457 = int_to_ptr.vmem [resolvable:$true] %s456
          %459 = dma.vmem_to_hbm [thread:$0]  %s457, 64, %s454, %s408
        $region44: #{tpu_custom_call.1} parent=31 // pred_fallthru
          _
      $region32: #{tpu_custom_call.1} parent=5 // pred_fallthru
        _
      %p460 = scmp.le.s32.totalorder 2, %s18
      // Predicated region
      $region45: #{tpu_custom_call.1} parent=5 // pred_check
        %p461 = pneg %p460
      $region46: #{tpu_custom_call.1} parent=5 // pred_check_branch
        %463 = sbr.rel (%p461) target = $region48
      $region47: #{tpu_custom_call.1} parent=5 // pred_region
        %s464 = ssub.s32 %s18, 2
        // Predicated region
        $region49: #{tpu_custom_call.1} parent=47 // pred_check
          %p465 = pneg %p150
        $region50: #{tpu_custom_call.1} parent=47 // pred_check_branch
          %467 = sbr.rel (%p465) target = $region52
        $region51: #{tpu_custom_call.1} parent=47 // pred_region
          %s468 = sand.u32 %s135, 1
          %s469 = scalar_lea.sflag [#allocation3], %s468
          %s470 = sand.u32 %s135, 1
          %s471 = smul.addr %s470, 4
          %s472 = scalar_lea.vmem [#allocation2], %s471
          %473 = dma.done %s469, 64
        $region52: #{tpu_custom_call.1} parent=47 // pred_fallthru
          _
        // Predicated region
        $region53: #{tpu_custom_call.1} parent=47 // pred_check
          %p474 = pneg %p180
        $region54: #{tpu_custom_call.1} parent=47 // pred_check_branch
          %476 = sbr.rel (%p474) target = $region56
        $region55: #{tpu_custom_call.1} parent=47 // pred_region
          %s477 = sand.u32 %s24, 1
          %s478 = scalar_lea.sflag [#allocation5], %s477
          %s479 = sand.u32 %s165, 1
          %s480 = smul.addr %s479, 4
          %s481 = scalar_lea.vmem [#allocation4], %s480
          %482 = dma.done %s478, 64
        $region56: #{tpu_custom_call.1} parent=47 // pred_fallthru
          _
        // Predicated region
        $region57: #{tpu_custom_call.1} parent=47 // pred_check
          %p483 = pneg %p210
        $region58: #{tpu_custom_call.1} parent=47 // pred_check_branch
          %485 = sbr.rel (%p483) target = $region60
        $region59: #{tpu_custom_call.1} parent=47 // pred_region
          %s486 = sand.u32 %s24, 1
          %s487 = scalar_lea.sflag [#allocation5], %s486
          %s488 = sand.u32 %s195, 1
          %s489 = smul.addr %s488, 4
          %s490 = scalar_lea.vmem [#allocation6], %s489
          %491 = dma.done %s487, 64
        $region60: #{tpu_custom_call.1} parent=47 // pred_fallthru
          _
      $region48: #{tpu_custom_call.1} parent=5 // pred_fallthru
        _
    $region6: #{tpu_custom_call.1} parent=1 // loop_footer
      %s22 = sadd.s32 1, %s18
    $region7: #{tpu_custom_call.1} parent=1 // loop_footer_branch
      %17 = sbr.rel target = $region3
    $region8: #{tpu_custom_call.1} parent=1 // loop_exit
      _
    %492 = vsyncpa [#allocation3], 1
    %s493 = scalar_lea.sflag [#allocation3], 1
    %494 = vsyncpa %s493, 1
    %495 = vsyncpa [#allocation5], 1
    %s496 = scalar_lea.sflag [#allocation5], 1
    %497 = vsyncpa %s496, 1

</llo_original>
